<compile_context>
chip_gen: v7x
topology: tpu7x:2x2x1
jax: 0.10.0
libtpu: 0.0.40
codegen_flags: <defaults>
</compile_context>

<pallas_src>
import functools

import jax
import jax.numpy as jnp
from jax.experimental import pallas as pl
from jax.experimental.pallas import tpu as pltpu


# ----------------------------------------------------------------------------
# Kernels
# ----------------------------------------------------------------------------
def _sage_layer_kernel(a_ref, x_ref, w_ref, b_ref, o_ref, *, apply_relu):
    """One SAGEConv layer for a (TM, N_pad) row tile of the adjacency.

    a_ref : (TM, N_pad)        bf16  row-normalized adjacency tile
    x_ref : (N_pad, F_pad)     bf16  all node features (resident across grid)
    w_ref : (2*F_pad, F_pad)   bf16  [[W_l], [W_r]] fused weights (resident)
    b_ref : (1, F_pad)         f32   bias
    o_ref : (TM, F_pad)               output rows for this tile
    """
    tm = a_ref.shape[0]
    i = pl.program_id(0)

    # mean-aggregation over neighbors: row-normalized A tile @ all features.
    agg = jnp.dot(a_ref[...], x_ref[...], preferred_element_type=jnp.float32)

    # self ("root") features for the same node rows.
    row0 = pl.multiple_of(i * tm, tm)
    x_self = x_ref[pl.ds(row0, tm), :]

    # fused lin_l / lin_r matmul:  [agg | x_self] @ [[W_l],[W_r]]  + b
    lhs = jnp.concatenate([agg.astype(jnp.bfloat16), x_self], axis=1)
    h = jnp.dot(lhs, w_ref[...], preferred_element_type=jnp.float32) + b_ref[...]

    if apply_relu:
        h = jnp.maximum(h, 0.0)
    # F.dropout(x, training=self.training): identity in eval mode.
    # TODO(synk): training-mode dropout (PRNG mask) not implemented.

    o_ref[...] = h.astype(o_ref.dtype)


def _mean_pool_kernel(p_ref, z_ref, o_ref):
    """global_mean_pool as an accumulated (G_pad, TM) @ (TM, F_pad) matmul."""
    @pl.when(pl.program_id(0) == 0)
    def _():
        o_ref[...] = jnp.zeros_like(o_ref)

    o_ref[...] += jnp.dot(p_ref[...], z_ref[...],
                          preferred_element_type=jnp.float32)


# ----------------------------------------------------------------------------
# pallas_call wrappers
# ----------------------------------------------------------------------------
def _sage_layer(a, x, w_cat, bias, *, apply_relu, tm, out_dtype):
    n_pad = a.shape[0]
    f_pad = x.shape[1]
    grid = (n_pad // tm,)

    flops = 2 * n_pad * n_pad * f_pad + 2 * n_pad * (2 * f_pad) * f_pad
    bytes_accessed = int(a.size) * 2 + int(x.size) * 2 + int(w_cat.size) * 2 \
        + n_pad * f_pad * jnp.dtype(out_dtype).itemsize

    kernel = functools.partial(_sage_layer_kernel, apply_relu=apply_relu)
    return pl.pallas_call(
        kernel,
        out_shape=jax.ShapeDtypeStruct((n_pad, f_pad), out_dtype),
        grid_spec=pltpu.PrefetchScalarGridSpec(
            num_scalar_prefetch=0,
            grid=grid,
            in_specs=[
                # A row tile: streamed / double-buffered across the grid.
                pl.BlockSpec((tm, n_pad), lambda i: (i, 0)),
                # X, fused weights, bias: constant block index -> stay resident.
                pl.BlockSpec((n_pad, f_pad), lambda i: (0, 0)),
                pl.BlockSpec((2 * f_pad, f_pad), lambda i: (0, 0)),
                pl.BlockSpec((1, f_pad), lambda i: (0, 0)),
            ],
            out_specs=pl.BlockSpec((tm, f_pad), lambda i: (i, 0)),
        ),
        compiler_params=pltpu.CompilerParams(
            # Node-row tiles are independent -> shard across v7x's 2 TCs.
            dimension_semantics=("parallel",),
            # NOTE: for large N, raise vmem_limit_bytes per generation
            # (v5e ~16MiB default scoped, v6e/v7x ~32MiB) and shrink tm on v5e/v7x.
        ),
        cost_estimate=pl.CostEstimate(flops=int(flops), transcendentals=0,
                                      bytes_accessed=int(bytes_accessed)),
    )(a, x, w_cat, bias)


def _mean_pool(p, z, *, tm):
    g_pad, n_pad = p.shape
    f_pad = z.shape[1]
    return pl.pallas_call(
        _mean_pool_kernel,
        out_shape=jax.ShapeDtypeStruct((g_pad, f_pad), jnp.float32),
        grid_spec=pltpu.PrefetchScalarGridSpec(
            num_scalar_prefetch=0,
            grid=(n_pad // tm,),
            in_specs=[
                pl.BlockSpec((g_pad, tm), lambda k: (0, k)),
                pl.BlockSpec((tm, f_pad), lambda k: (k, 0)),
            ],
            # constant block index across the reduction axis -> output-resident
            # accumulator (init / accumulate via pl.when inside the kernel).
            out_specs=pl.BlockSpec((g_pad, f_pad), lambda k: (0, 0)),
        ),
        compiler_params=pltpu.CompilerParams(
            dimension_semantics=("arbitrary",),
        ),
        cost_estimate=pl.CostEstimate(
            flops=2 * g_pad * n_pad * f_pad, transcendentals=0,
            bytes_accessed=int(p.size) * 4 + int(z.size) * 4 + g_pad * f_pad * 4),
    )(p, z)


# ----------------------------------------------------------------------------
# Forward pass (JAX glue: padding, dense normalized adjacency, pooling matrix)
# ----------------------------------------------------------------------------
def _round_up(v, m):
    return ((v + m - 1) // m) * m


def graphsage_forward(x, edge_index, batch, params, num_graphs, *, tm=128):
    """x: [N, in_ch] float, edge_index: [2, E] int32, batch: [N] int32."""
    x = x.astype(jnp.float32)
    n, in_ch = x.shape
    wl1, wr1, b1, wl2, wr2, b2 = params
    hid = wl1.shape[1]
    out_ch = wl2.shape[1]

    f_pad = 128                                 # lane-dense channel width
    g_pad = 8                                   # sublane-aligned graph count
    n_pad = _round_up(max(n, tm), tm)           # node axis, multiple of tile

    # Dense row-normalized adjacency for mean aggregation, padded, bf16.
    src, dst = edge_index[0], edge_index[1]
    adj = jnp.zeros((n_pad, n_pad), jnp.float32).at[dst, src].add(1.0)
    deg = jnp.sum(adj, axis=1, keepdims=True)
    a = (adj / jnp.where(deg > 0, deg, 1.0)).astype(jnp.bfloat16)

    # Padded node features (zeros outside real rows/cols).
    xp = jnp.zeros((n_pad, f_pad), jnp.bfloat16).at[:n, :in_ch].set(
        x.astype(jnp.bfloat16))

    # Fused + padded parameters:  W_cat = [[W_l], [W_r]]  -> (2*F_pad, F_pad).
    def pack(wl, wr, b, fin, fout):
        wcat = jnp.zeros((2 * f_pad, f_pad), jnp.bfloat16)
        wcat = wcat.at[:fin, :fout].set(wl.astype(jnp.bfloat16))
        wcat = wcat.at[f_pad:f_pad + fin, :fout].set(wr.astype(jnp.bfloat16))
        bp = jnp.zeros((1, f_pad), jnp.float32).at[0, :fout].set(
            b.reshape(-1).astype(jnp.float32))
        return wcat, bp

    w1, b1p = pack(wl1, wr1, b1, in_ch, hid)
    w2, b2p = pack(wl2, wr2, b2, hid, out_ch)

    # Pooling matrix P[g, i] = 1 / |graph g| (zeros on padded rows/cols).
    onehot = (batch[None, :] == jnp.arange(num_graphs)[:, None]).astype(jnp.float32)
    counts = jnp.sum(onehot, axis=1, keepdims=True)
    p = onehot / jnp.where(counts > 0, counts, 1.0)
    pp = jnp.zeros((g_pad, n_pad), jnp.float32).at[:num_graphs, :n].set(p)

    # SAGEConv 1 (+ReLU), SAGEConv 2, global_mean_pool.
    h = _sage_layer(a, xp, w1, b1p, apply_relu=True, tm=tm,
                    out_dtype=jnp.bfloat16)
    z = _sage_layer(a, h, w2, b2p, apply_relu=False, tm=tm,
                    out_dtype=jnp.float32)
    pooled = _mean_pool(pp, z, tm=tm)

    return pooled[:num_graphs, :out_ch]


def init_params(key, in_channels, hidden_channels, out_channels):
    """Synthetic weights with the shapes SAGEConv implies
       (lin_l: (in,out) with bias, lin_r: (in,out) no bias, PyG default)."""
    ks = jax.random.split(key, 4)

    def glorot(k, fan_in, fan_out):
        lim = jnp.sqrt(6.0 / (fan_in + fan_out))
        return jax.random.uniform(k, (fan_in, fan_out), jnp.float32, -lim, lim)

    wl1 = glorot(ks[0], in_channels, hidden_channels)
    wr1 = glorot(ks[1], in_channels, hidden_channels)
    b1 = jnp.zeros((1, hidden_channels), jnp.float32)
    wl2 = glorot(ks[2], hidden_channels, out_channels)
    wr2 = glorot(ks[3], hidden_channels, out_channels)
    b2 = jnp.zeros((1, out_channels), jnp.float32)
    return (wl1, wr1, b1, wl2, wr2, b2)


if __name__ == "__main__":
    key = jax.random.PRNGKey(0)
    k_x, k_e, k_p = jax.random.split(key, 3)

    # Small synthetic graph batch: 2 graphs, 16 nodes total, 8 input features.
    num_nodes = 16
    num_edges = 40
    in_channels = 8
    hidden_channels = 16
    out_channels = 8
    num_graphs = 2

    x = jax.random.normal(k_x, (num_nodes, in_channels), jnp.float32)
    edge_index = jax.random.randint(k_e, (2, num_edges), 0, num_nodes, jnp.int32)
    batch = jnp.concatenate([
        jnp.zeros((num_nodes // 2,), jnp.int32),
        jnp.ones((num_nodes - num_nodes // 2,), jnp.int32),
    ])

    params = init_params(k_p, in_channels, hidden_channels, out_channels)

    fwd = jax.jit(functools.partial(graphsage_forward, num_graphs=num_graphs))
    out = jax.block_until_ready(fwd(x, edge_index, batch, params))

    assert out.shape == (num_graphs, out_channels)
    assert jnp.all(jnp.isfinite(out))
    print("KERNEL_OK")
</pallas_src>

<mosaic_0001>
module attributes {stable_mosaic.version = 11 : i64} {
  func.func @_sage_layer_kernel(%arg0: i32, %arg1: memref<128x128xbf16, #tpu.memory_space<vmem>>, %arg2: memref<128x128xbf16, #tpu.memory_space<vmem>>, %arg3: memref<256x128xbf16, #tpu.memory_space<vmem>>, %arg4: memref<1x128xf32, #tpu.memory_space<vmem>>, %arg5: memref<128x128xbf16, #tpu.memory_space<vmem>>) attributes {dimension_semantics = [#tpu.dimension_semantics<parallel>], iteration_bounds = array<i64: 1>, scalar_prefetch = 0 : i64, scratch_operands = 0 : i64, tpu.core_type = #tpu.core_type<tc>, window_params = [{transform_indices = @transform_0, window_bounds = array<i64: 128, 128>}, {pipeline_mode = #tpu.pipeline_mode<synchronous>, transform_indices = @transform_1, window_bounds = array<i64: 128, 128>}, {pipeline_mode = #tpu.pipeline_mode<synchronous>, transform_indices = @transform_2, window_bounds = array<i64: 256, 128>}, {pipeline_mode = #tpu.pipeline_mode<synchronous>, transform_indices = @transform_3, window_bounds = array<i64: 1, 128>}, {transform_indices = @transform_4, window_bounds = array<i64: 128, 128>}]} {
    %c0 = arith.constant 0 : index
    %c0_0 = arith.constant 0 : index
    %0 = vector.load %arg1[%c0, %c0_0] : memref<128x128xbf16, #tpu.memory_space<vmem>>, vector<128x128xbf16>
    %c0_1 = arith.constant 0 : index
    %c0_2 = arith.constant 0 : index
    %1 = vector.load %arg2[%c0_1, %c0_2] : memref<128x128xbf16, #tpu.memory_space<vmem>>, vector<128x128xbf16>
    %cst = arith.constant dense<0.000000e+00> : vector<128x128xf32>
    %2 = tpu.matmul %0, %1, %cst {dimension_numbers = #tpu.dot_dimension_numbers<[1], [0], [0], [1], [0, 0, 1, 1], [], []>} : vector<128x128xbf16>, vector<128x128xbf16>, vector<128x128xf32> -> vector<128x128xf32>
    %c128_i32 = arith.constant 128 : i32
    %3 = arith.muli %arg0, %c128_i32 : i32
    %4 = tpu.assume_multiple %3, 128 : i32
    %5 = arith.index_cast %4 : i32 to index
    %c0_3 = arith.constant 0 : index
    %6 = vector.load %arg2[%5, %c0_3] : memref<128x128xbf16, #tpu.memory_space<vmem>>, vector<128x128xbf16>
    %7 = arith.truncf %2 : vector<128x128xf32> to vector<128x128xbf16>
    %8 = tpu.concatenate %7, %6 in 1 : vector<128x128xbf16>, vector<128x128xbf16> -> vector<128x256xbf16>
    %c0_4 = arith.constant 0 : index
    %c0_5 = arith.constant 0 : index
    %9 = vector.load %arg3[%c0_4, %c0_5] : memref<256x128xbf16, #tpu.memory_space<vmem>>, vector<256x128xbf16>
    %cst_6 = arith.constant dense<0.000000e+00> : vector<128x128xf32>
    %10 = tpu.matmul %8, %9, %cst_6 {dimension_numbers = #tpu.dot_dimension_numbers<[1], [0], [0], [1], [0, 0, 1, 1], [], []>} : vector<128x256xbf16>, vector<256x128xbf16>, vector<128x128xf32> -> vector<128x128xf32>
    %c0_7 = arith.constant 0 : index
    %c0_8 = arith.constant 0 : index
    %11 = vector.load %arg4[%c0_7, %c0_8] : memref<1x128xf32, #tpu.memory_space<vmem>>, vector<1x128xf32>
    %12 = vector.broadcast %11 : vector<1x128xf32> to vector<128x128xf32>
    %13 = arith.addf %10, %12 : vector<128x128xf32>
    %cst_9 = arith.constant 0.000000e+00 : f32
    %14 = vector.broadcast %cst_9 : f32 to vector<128x128xf32>
    %15 = arith.maximumf %13, %14 : vector<128x128xf32>
    %16 = arith.truncf %15 : vector<128x128xf32> to vector<128x128xbf16>
    %c0_10 = arith.constant 0 : index
    %c0_11 = arith.constant 0 : index
    %17 = vector.load %arg5[%c0_10, %c0_11] : memref<128x128xbf16, #tpu.memory_space<vmem>>, vector<128x128xbf16>
    tpu.vector_store %arg5[%c0_10, %c0_11], %16 {strides = array<i32>} : memref<128x128xbf16, #tpu.memory_space<vmem>>, vector<128x128xbf16>,
    return
  }
  func.func @transform_0(%arg0: i32) -> (i32, i32) {
    %c0_i32 = arith.constant 0 : i32
    %c0_i32_0 = arith.constant 0 : i32
    return %arg0, %c0_i32 : i32, i32
  }
  func.func @transform_1(%arg0: i32) -> (i32, i32) {
    %c0_i32 = arith.constant 0 : i32
    %c0_i32_0 = arith.constant 0 : i32
    %c0_i32_1 = arith.constant 0 : i32
    return %c0_i32, %c0_i32_0 : i32, i32
  }
  func.func @transform_2(%arg0: i32) -> (i32, i32) {
    %c0_i32 = arith.constant 0 : i32
    %c0_i32_0 = arith.constant 0 : i32
    %c0_i32_1 = arith.constant 0 : i32
    return %c0_i32, %c0_i32_0 : i32, i32
  }
  func.func @transform_3(%arg0: i32) -> (i32, i32) {
    %c0_i32 = arith.constant 0 : i32
    %c0_i32_0 = arith.constant 0 : i32
    %c0_i32_1 = arith.constant 0 : i32
    return %c0_i32, %c0_i32_0 : i32, i32
  }
  func.func @transform_4(%arg0: i32) -> (i32, i32) {
    %c0_i32 = arith.constant 0 : i32
    %c0_i32_0 = arith.constant 0 : i32
    return %arg0, %c0_i32 : i32, i32
  }
}

module attributes {stable_mosaic.version = 11 : i64} {
  func.func @_sage_layer_kernel(%arg0: i32, %arg1: memref<128x128xbf16, #tpu.memory_space<vmem>>, %arg2: memref<128x128xbf16, #tpu.memory_space<vmem>>, %arg3: memref<256x128xbf16, #tpu.memory_space<vmem>>, %arg4: memref<1x128xf32, #tpu.memory_space<vmem>>, %arg5: memref<128x128xf32, #tpu.memory_space<vmem>>) attributes {dimension_semantics = [#tpu.dimension_semantics<parallel>], iteration_bounds = array<i64: 1>, scalar_prefetch = 0 : i64, scratch_operands = 0 : i64, tpu.core_type = #tpu.core_type<tc>, window_params = [{transform_indices = @transform_0, window_bounds = array<i64: 128, 128>}, {pipeline_mode = #tpu.pipeline_mode<synchronous>, transform_indices = @transform_1, window_bounds = array<i64: 128, 128>}, {pipeline_mode = #tpu.pipeline_mode<synchronous>, transform_indices = @transform_2, window_bounds = array<i64: 256, 128>}, {pipeline_mode = #tpu.pipeline_mode<synchronous>, transform_indices = @transform_3, window_bounds = array<i64: 1, 128>}, {transform_indices = @transform_4, window_bounds = array<i64: 128, 128>}]} {
    %c0 = arith.constant 0 : index
    %c0_0 = arith.constant 0 : index
    %0 = vector.load %arg1[%c0, %c0_0] : memref<128x128xbf16, #tpu.memory_space<vmem>>, vector<128x128xbf16>
    %c0_1 = arith.constant 0 : index
    %c0_2 = arith.constant 0 : index
    %1 = vector.load %arg2[%c0_1, %c0_2] : memref<128x128xbf16, #tpu.memory_space<vmem>>, vector<128x128xbf16>
    %cst = arith.constant dense<0.000000e+00> : vector<128x128xf32>
    %2 = tpu.matmul %0, %1, %cst {dimension_numbers = #tpu.dot_dimension_numbers<[1], [0], [0], [1], [0, 0, 1, 1], [], []>} : vector<128x128xbf16>, vector<128x128xbf16>, vector<128x128xf32> -> vector<128x128xf32>
    %c128_i32 = arith.constant 128 : i32
    %3 = arith.muli %arg0, %c128_i32 : i32
    %4 = tpu.assume_multiple %3, 128 : i32
    %5 = arith.index_cast %4 : i32 to index
    %c0_3 = arith.constant 0 : index
    %6 = vector.load %arg2[%5, %c0_3] : memref<128x128xbf16, #tpu.memory_space<vmem>>, vector<128x128xbf16>
    %7 = arith.truncf %2 : vector<128x128xf32> to vector<128x128xbf16>
    %8 = tpu.concatenate %7, %6 in 1 : vector<128x128xbf16>, vector<128x128xbf16> -> vector<128x256xbf16>
    %c0_4 = arith.constant 0 : index
    %c0_5 = arith.constant 0 : index
    %9 = vector.load %arg3[%c0_4, %c0_5] : memref<256x128xbf16, #tpu.memory_space<vmem>>, vector<256x128xbf16>
    %cst_6 = arith.constant dense<0.000000e+00> : vector<128x128xf32>
    %10 = tpu.matmul %8, %9, %cst_6 {dimension_numbers = #tpu.dot_dimension_numbers<[1], [0], [0], [1], [0, 0, 1, 1], [], []>} : vector<128x256xbf16>, vector<256x128xbf16>, vector<128x128xf32> -> vector<128x128xf32>
    %c0_7 = arith.constant 0 : index
    %c0_8 = arith.constant 0 : index
    %11 = vector.load %arg4[%c0_7, %c0_8] : memref<1x128xf32, #tpu.memory_space<vmem>>, vector<1x128xf32>
    %12 = vector.broadcast %11 : vector<1x128xf32> to vector<128x128xf32>
    %13 = arith.addf %10, %12 : vector<128x128xf32>
    %c0_9 = arith.constant 0 : index
    %c0_10 = arith.constant 0 : index
    %14 = vector.load %arg5[%c0_9, %c0_10] : memref<128x128xf32, #tpu.memory_space<vmem>>, vector<128x128xf32>
    tpu.vector_store %arg5[%c0_9, %c0_10], %13 {strides = array<i32>} : memref<128x128xf32, #tpu.memory_space<vmem>>, vector<128x128xf32>,
    return
  }
  func.func @transform_0(%arg0: i32) -> (i32, i32) {
    %c0_i32 = arith.constant 0 : i32
    %c0_i32_0 = arith.constant 0 : i32
    return %arg0, %c0_i32 : i32, i32
  }
  func.func @transform_1(%arg0: i32) -> (i32, i32) {
    %c0_i32 = arith.constant 0 : i32
    %c0_i32_0 = arith.constant 0 : i32
    %c0_i32_1 = arith.constant 0 : i32
    return %c0_i32, %c0_i32_0 : i32, i32
  }
  func.func @transform_2(%arg0: i32) -> (i32, i32) {
    %c0_i32 = arith.constant 0 : i32
    %c0_i32_0 = arith.constant 0 : i32
    %c0_i32_1 = arith.constant 0 : i32
    return %c0_i32, %c0_i32_0 : i32, i32
  }
  func.func @transform_3(%arg0: i32) -> (i32, i32) {
    %c0_i32 = arith.constant 0 : i32
    %c0_i32_0 = arith.constant 0 : i32
    %c0_i32_1 = arith.constant 0 : i32
    return %c0_i32, %c0_i32_0 : i32, i32
  }
  func.func @transform_4(%arg0: i32) -> (i32, i32) {
    %c0_i32 = arith.constant 0 : i32
    %c0_i32_0 = arith.constant 0 : i32
    return %arg0, %c0_i32 : i32, i32
  }
}

module attributes {stable_mosaic.version = 11 : i64} {
  func.func @_mean_pool_kernel(%arg0: i32, %arg1: memref<8x128xf32, #tpu.memory_space<vmem>>, %arg2: memref<128x128xf32, #tpu.memory_space<vmem>>, %arg3: memref<8x128xf32, #tpu.memory_space<vmem>>) attributes {dimension_semantics = [#tpu.dimension_semantics<arbitrary>], iteration_bounds = array<i64: 1>, scalar_prefetch = 0 : i64, scratch_operands = 0 : i64, tpu.core_type = #tpu.core_type<tc>, window_params = [{transform_indices = @transform_0, window_bounds = array<i64: 8, 128>}, {transform_indices = @transform_1, window_bounds = array<i64: 128, 128>}, {pipeline_mode = #tpu.pipeline_mode<synchronous>, transform_indices = @transform_2, window_bounds = array<i64: 8, 128>}]} {
    %c0_i32 = arith.constant 0 : i32
    %0 = arith.cmpi eq, %arg0, %c0_i32 : i32
    %1 = arith.extui %0 : i1 to i32
    %c0_i32_0 = arith.constant 0 : i32
    %2 = arith.cmpi ne, %1, %c0_i32_0 : i32
    scf.if %2 {
      %cst_8 = arith.constant 0.000000e+00 : f32
      %9 = vector.broadcast %cst_8 : f32 to vector<8x128xf32>
      %c0_9 = arith.constant 0 : index
      %c0_10 = arith.constant 0 : index
      %10 = vector.load %arg3[%c0_9, %c0_10] : memref<8x128xf32, #tpu.memory_space<vmem>>, vector<8x128xf32>
      tpu.vector_store %arg3[%c0_9, %c0_10], %9 {strides = array<i32>} : memref<8x128xf32, #tpu.memory_space<vmem>>, vector<8x128xf32>,
    } else {
    }
    %c0 = arith.constant 0 : index
    %c0_1 = arith.constant 0 : index
    %3 = vector.load %arg3[%c0, %c0_1] : memref<8x128xf32, #tpu.memory_space<vmem>>, vector<8x128xf32>
    %c0_2 = arith.constant 0 : index
    %c0_3 = arith.constant 0 : index
    %4 = vector.load %arg1[%c0_2, %c0_3] : memref<8x128xf32, #tpu.memory_space<vmem>>, vector<8x128xf32>
    %c0_4 = arith.constant 0 : index
    %c0_5 = arith.constant 0 : index
    %5 = vector.load %arg2[%c0_4, %c0_5] : memref<128x128xf32, #tpu.memory_space<vmem>>, vector<128x128xf32>
    %cst = arith.constant dense<0.000000e+00> : vector<8x128xf32>
    %6 = tpu.matmul %4, %5, %cst {dimension_numbers = #tpu.dot_dimension_numbers<[1], [0], [0], [1], [0, 0, 1, 1], [], []>} : vector<8x128xf32>, vector<128x128xf32>, vector<8x128xf32> -> vector<8x128xf32>
    %7 = arith.addf %3, %6 : vector<8x128xf32>
    %c0_6 = arith.constant 0 : index
    %c0_7 = arith.constant 0 : index
    %8 = vector.load %arg3[%c0_6, %c0_7] : memref<8x128xf32, #tpu.memory_space<vmem>>, vector<8x128xf32>
    tpu.vector_store %arg3[%c0_6, %c0_7], %7 {strides = array<i32>} : memref<8x128xf32, #tpu.memory_space<vmem>>, vector<8x128xf32>,
    return
  }
  func.func @transform_0(%arg0: i32) -> (i32, i32) {
    %c0_i32 = arith.constant 0 : i32
    %c0_i32_0 = arith.constant 0 : i32
    return %c0_i32, %arg0 : i32, i32
  }
  func.func @transform_1(%arg0: i32) -> (i32, i32) {
    %c0_i32 = arith.constant 0 : i32
    %c0_i32_0 = arith.constant 0 : i32
    return %arg0, %c0_i32 : i32, i32
  }
  func.func @transform_2(%arg0: i32) -> (i32, i32) {
    %c0_i32 = arith.constant 0 : i32
    %c0_i32_0 = arith.constant 0 : i32
    %c0_i32_1 = arith.constant 0 : i32
    return %c0_i32, %c0_i32_0 : i32, i32
  }
}

</mosaic_0001>

<llo_original>
// kernel: graphsage_forward.3
$region0: #{graphsage_forward.3}
  #allocation0 [shape = 'u32[]', space=smem, size = 0x4, offset = 0x4, fixed_abs, tag = 'smem constant byte address 0x4 - core index']
  #allocation1 [shape = 'u32[144,128]{1,0:T(1,128)}', space=vmem, size = 0x12000, scoped, tag = 'internal scratch']
  %s0 = inlined_call_operand.vmem [shape: bf16[128,128], index: 0, kind: input, shape index: {}]
  %s1 = inlined_call_operand.vmem [shape: bf16[128,128], index: 1, kind: input, shape index: {}]
  %s2 = inlined_call_operand.vmem [shape: bf16[256,128], index: 2, kind: input, shape index: {}]
  %s3 = inlined_call_operand.vmem [shape: f32[1,128], index: 3, kind: input, shape index: {}]
  %s4 = inlined_call_operand.vmem [shape: bf16[128,128], index: 4, kind: output, shape index: {}]
  %s5 = sld [smem:[#allocation0]]
  $region26: #{graphsage_forward.3} parent=0
    _
  %s7 = ssub.s32 1, %s5
  %s8 = scalar_select 0, %s7, %s5
  // Predicated region
  $region2: #{graphsage_forward.3} parent=0 // pred_check
    _
  $region3: #{graphsage_forward.3} parent=0 // pred_check_branch
    %10 = sbr.rel (0) target = $region5
  $region4: #{graphsage_forward.3} parent=0 // pred_region
    _
  $region5: #{graphsage_forward.3} parent=0 // pred_fallthru
    _
  // Predicated region
  $region6: #{graphsage_forward.3} parent=0 // pred_check
    _
  $region7: #{graphsage_forward.3} parent=0 // pred_check_branch
    %12 = sbr.rel (0) target = $region9
  $region8: #{graphsage_forward.3} parent=0 // pred_region
    _
  $region9: #{graphsage_forward.3} parent=0 // pred_fallthru
    _
  // Predicated region
  $region10: #{graphsage_forward.3} parent=0 // pred_check
    _
  $region11: #{graphsage_forward.3} parent=0 // pred_check_branch
    %14 = sbr.rel (0) target = $region13
  $region12: #{graphsage_forward.3} parent=0 // pred_region
    _
  $region13: #{graphsage_forward.3} parent=0 // pred_fallthru
    _
  // Predicated region
  $region14: #{graphsage_forward.3} parent=0 // pred_check
    _
  $region15: #{graphsage_forward.3} parent=0 // pred_check_branch
    %16 = sbr.rel (0) target = $region17
  $region16: #{graphsage_forward.3} parent=0 // pred_region
    _
  $region17: #{graphsage_forward.3} parent=0 // pred_fallthru
    _
  %v18 = vld [vmem:[%s0] sm:$0xf]
  %v19 = vld [vmem:[%s0 + $0x4] sm:$0xf]
  %v20 = vld [vmem:[%s0 + $0x8] sm:$0xf]
  %v21 = vld [vmem:[%s0 + $0xc] sm:$0xf]
  %v22 = vld [vmem:[%s0 + $0x10] sm:$0xf]
  %v23 = vld [vmem:[%s0 + $0x14] sm:$0xf]
  %v24 = vld [vmem:[%s0 + $0x18] sm:$0xf]
  %v25 = vld [vmem:[%s0 + $0x1c] sm:$0xf]
  %v26 = vld [vmem:[%s0 + $0x20] sm:$0xf]
  %v27 = vld [vmem:[%s0 + $0x24] sm:$0xf]
  %v28 = vld [vmem:[%s0 + $0x28] sm:$0xf]
  %v29 = vld [vmem:[%s0 + $0x2c] sm:$0xf]
  %v30 = vld [vmem:[%s0 + $0x30] sm:$0xf]
  %v31 = vld [vmem:[%s0 + $0x34] sm:$0xf]
  %v32 = vld [vmem:[%s0 + $0x38] sm:$0xf]
  %v33 = vld [vmem:[%s0 + $0x3c] sm:$0xf]
  %v34 = vld [vmem:[%s1] sm:$0xf]
  %v35 = vld [vmem:[%s1 + $0x4] sm:$0xf]
  %v36 = vld [vmem:[%s1 + $0x8] sm:$0xf]
  %v37 = vld [vmem:[%s1 + $0xc] sm:$0xf]
  %v38 = vld [vmem:[%s1 + $0x10] sm:$0xf]
  %v39 = vld [vmem:[%s1 + $0x14] sm:$0xf]
  %v40 = vld [vmem:[%s1 + $0x18] sm:$0xf]
  %v41 = vld [vmem:[%s1 + $0x1c] sm:$0xf]
  %v42 = vld [vmem:[%s1 + $0x20] sm:$0xf]
  %v43 = vld [vmem:[%s1 + $0x24] sm:$0xf]
  %v44 = vld [vmem:[%s1 + $0x28] sm:$0xf]
  %v45 = vld [vmem:[%s1 + $0x2c] sm:$0xf]
  %v46 = vld [vmem:[%s1 + $0x30] sm:$0xf]
  %v47 = vld [vmem:[%s1 + $0x34] sm:$0xf]
  %v48 = vld [vmem:[%s1 + $0x38] sm:$0xf]
  %v49 = vld [vmem:[%s1 + $0x3c] sm:$0xf]
  %v66 = vunpack.c.l.b16 %v18
  %v67 = vunpack.c.l.b16 %v19
  %v68 = vunpack.c.l.b16 %v20
  %v69 = vunpack.c.l.b16 %v21
  %v70 = vunpack.c.l.b16 %v22
  %v71 = vunpack.c.l.b16 %v23
  %v72 = vunpack.c.l.b16 %v24
  %v73 = vunpack.c.l.b16 %v25
  %v74 = vunpack.c.l.b16 %v26
  %v75 = vunpack.c.l.b16 %v27
  %v76 = vunpack.c.l.b16 %v28
  %v77 = vunpack.c.l.b16 %v29
  %v78 = vunpack.c.l.b16 %v30
  %v79 = vunpack.c.l.b16 %v31
  %v80 = vunpack.c.l.b16 %v32
  %v81 = vunpack.c.l.b16 %v33
  %v82 = vpack.c.b16 %v67, %v66
  %v83 = vpack.c.b16 %v69, %v68
  %v84 = vpack.c.b16 %v71, %v70
  %v85 = vpack.c.b16 %v73, %v72
  %v86 = vpack.c.b16 %v75, %v74
  %v87 = vpack.c.b16 %v77, %v76
  %v88 = vpack.c.b16 %v79, %v78
  %v89 = vpack.c.b16 %v81, %v80
  %v114 = vunpack.c.l.b16 %v34
  %v115 = vunpack.c.l.b16 %v35
  %v116 = vunpack.c.l.b16 %v36
  %v117 = vunpack.c.l.b16 %v37
  %v118 = vunpack.c.l.b16 %v38
  %v119 = vunpack.c.l.b16 %v39
  %v120 = vunpack.c.l.b16 %v40
  %v121 = vunpack.c.l.b16 %v41
  %v122 = vunpack.c.l.b16 %v42
  %v123 = vunpack.c.l.b16 %v43
  %v124 = vunpack.c.l.b16 %v44
  %v125 = vunpack.c.l.b16 %v45
  %v126 = vunpack.c.l.b16 %v46
  %v127 = vunpack.c.l.b16 %v47
  %v128 = vunpack.c.l.b16 %v48
  %v129 = vunpack.c.l.b16 %v49
  %v130 = vpack.c.b16 %v115, %v114
  %v131 = vpack.c.b16 %v117, %v116
  %v132 = vpack.c.b16 %v119, %v118
  %v133 = vpack.c.b16 %v121, %v120
  %v134 = vpack.c.b16 %v123, %v122
  %v135 = vpack.c.b16 %v125, %v124
  %v136 = vpack.c.b16 %v127, %v126
  %v137 = vpack.c.b16 %v129, %v128
  %146 = vmatprep.subr.bf16.mxu0 0
  %147 = vmatpush1.bf16.msra.mxu0 %v130
  %148 = vmatprep.subr.bf16.mxu0 0
  %149 = vmatpush1.bf16.msra.mxu0 %v131
  %150 = vmatprep.subr.bf16.mxu0 0
  %151 = vmatpush1.bf16.msra.mxu0 %v132
  %152 = vmatprep.subr.bf16.mxu0 0
  %153 = vmatpush1.bf16.msra.mxu0 %v133
  %154 = vmatprep.subr.bf16.mxu0 0
  %155 = vmatpush1.bf16.msra.mxu0 %v134
  %156 = vmatprep.subr.bf16.mxu0 0
  %157 = vmatpush1.bf16.msra.mxu0 %v135
  %158 = vmatprep.subr.bf16.mxu0 0
  %159 = vmatpush1.bf16.msra.mxu0 %v136
  %160 = vmatprep.subr.bf16.mxu0 0
  %161 = vmatpush1.bf16.msra.mxu0 %v137
  %162 = vmatprep.subr.bf16.mxu0 0
  %163 = vmatpush1.bf16.msra.mxu0 0
  %164 = vmatprep.subr.bf16.mxu0 0
  %165 = vmatpush1.bf16.msra.mxu0 0
  %166 = vmatprep.subr.bf16.mxu0 0
  %167 = vmatpush1.bf16.msra.mxu0 0
  %168 = vmatprep.subr.bf16.mxu0 0
  %169 = vmatpush1.bf16.msra.mxu0 0
  %170 = vmatprep.subr.bf16.mxu0 0
  %171 = vmatpush1.bf16.msra.mxu0 0
  %172 = vmatprep.subr.bf16.mxu0 0
  %173 = vmatpush1.bf16.msra.mxu0 0
  %174 = vmatprep.subr.bf16.mxu0 0
  %175 = vmatpush1.bf16.msra.mxu0 0
  %176 = vmatprep.subr.bf16.mxu0 0
  %177 = vmatpush1.bf16.msra.mxu0 0
  %178 = vmatprep.mubr.bf16.mxu0 0
  %179 = vmatmul.mubr.bf16.gmra.mrb[0].mxu0 %v82
  %v180 = vpop.f32.mrb[0].mxu0
  %v181 = vadd.f32 0.0, %v180
  %v182 = vpop.f32.mrb[0].mxu0
  %v183 = vpop.f32.mrb[0].mxu0
  %v184 = vadd.f32 0.0, %v183
  %v185 = vpop.f32.mrb[0].mxu0
  %186 = vmatprep.mubr.bf16.mxu0 0
  %187 = vmatmul.mubr.bf16.gmra.mrb[0].mxu0 %v83
  %v188 = vpop.f32.mrb[0].mxu0
  %v189 = vadd.f32 0.0, %v188
  %v190 = vpop.f32.mrb[0].mxu0
  %v191 = vpop.f32.mrb[0].mxu0
  %v192 = vadd.f32 0.0, %v191
  %v193 = vpop.f32.mrb[0].mxu0
  %194 = vmatprep.mubr.bf16.mxu0 0
  %195 = vmatmul.mubr.bf16.gmra.mrb[0].mxu0 %v84
  %v196 = vpop.f32.mrb[0].mxu0
  %v197 = vadd.f32 0.0, %v196
  %v198 = vpop.f32.mrb[0].mxu0
  %v199 = vpop.f32.mrb[0].mxu0
  %v200 = vadd.f32 0.0, %v199
  %v201 = vpop.f32.mrb[0].mxu0
  %202 = vmatprep.mubr.bf16.mxu0 0
  %203 = vmatmul.mubr.bf16.gmra.mrb[0].mxu0 %v85
  %v204 = vpop.f32.mrb[0].mxu0
  %v205 = vadd.f32 0.0, %v204
  %v206 = vpop.f32.mrb[0].mxu0
  %v207 = vpop.f32.mrb[0].mxu0
  %v208 = vadd.f32 0.0, %v207
  %v209 = vpop.f32.mrb[0].mxu0
  %210 = vmatprep.mubr.bf16.mxu0 0
  %211 = vmatmul.mubr.bf16.gmra.mrb[0].mxu0 %v86
  %v212 = vpop.f32.mrb[0].mxu0
  %v213 = vadd.f32 0.0, %v212
  %v214 = vpop.f32.mrb[0].mxu0
  %v215 = vpop.f32.mrb[0].mxu0
  %v216 = vadd.f32 0.0, %v215
  %v217 = vpop.f32.mrb[0].mxu0
  %218 = vmatprep.mubr.bf16.mxu0 0
  %219 = vmatmul.mubr.bf16.gmra.mrb[0].mxu0 %v87
  %v220 = vpop.f32.mrb[0].mxu0
  %v221 = vadd.f32 0.0, %v220
  %v222 = vpop.f32.mrb[0].mxu0
  %v223 = vpop.f32.mrb[0].mxu0
  %v224 = vadd.f32 0.0, %v223
  %v225 = vpop.f32.mrb[0].mxu0
  %226 = vmatprep.mubr.bf16.mxu0 0
  %227 = vmatmul.mubr.bf16.gmra.mrb[0].mxu0 %v88
  %v228 = vpop.f32.mrb[0].mxu0
  %v229 = vadd.f32 0.0, %v228
  %v230 = vpop.f32.mrb[0].mxu0
  %v231 = vpop.f32.mrb[0].mxu0
  %v232 = vadd.f32 0.0, %v231
  %v233 = vpop.f32.mrb[0].mxu0
  %234 = vmatprep.mubr.bf16.mxu0 0
  %235 = vmatmul.mubr.bf16.gmra.mrb[0].mxu0 %v89
  %v236 = vpop.f32.mrb[0].mxu0
  %v237 = vadd.f32 0.0, %v236
  %v238 = vpop.f32.mrb[0].mxu0
  %v239 = vpop.f32.mrb[0].mxu0
  %v240 = vadd.f32 0.0, %v239
  %v241 = vpop.f32.mrb[0].mxu0
  %242 = vdwg.mxu0
  %s243 = smul.u32 0, 128
  %s244 = sshra.s32 %s243, 3
  %s245 = sand.u32 %s243, 7
  %s246 = smul.addr %s244, 4
  %s247 = scalar_lea.vmem %s1, %s246
  %v248 = vld [vmem:[%s247] sm:$0xf]
  %v249 = vld [vmem:[%s247 + $0x4] sm:$0xf]
  %v250 = vld [vmem:[%s247 + $0x8] sm:$0xf]
  %v251 = vld [vmem:[%s247 + $0xc] sm:$0xf]
  %v252 = vld [vmem:[%s247 + $0x10] sm:$0xf]
  %v253 = vld [vmem:[%s247 + $0x14] sm:$0xf]
  %v254 = vld [vmem:[%s247 + $0x18] sm:$0xf]
  %v255 = vld [vmem:[%s247 + $0x1c] sm:$0xf]
  %v256 = vld [vmem:[%s247 + $0x20] sm:$0xf]
  %v257 = vld [vmem:[%s247 + $0x24] sm:$0xf]
  %v258 = vld [vmem:[%s247 + $0x28] sm:$0xf]
  %v259 = vld [vmem:[%s247 + $0x2c] sm:$0xf]
  %v260 = vld [vmem:[%s247 + $0x30] sm:$0xf]
  %v261 = vld [vmem:[%s247 + $0x34] sm:$0xf]
  %v262 = vld [vmem:[%s247 + $0x38] sm:$0xf]
  %v263 = vld [vmem:[%s247 + $0x3c] sm:$0xf]
  %v264 = vpack.c.bf16 %v184, %v181
  %v265 = vpack.c.bf16 %v192, %v189
  %v266 = vpack.c.bf16 %v200, %v197
  %v267 = vpack.c.bf16 %v208, %v205
  %v268 = vpack.c.bf16 %v216, %v213
  %v269 = vpack.c.bf16 %v224, %v221
  %v270 = vpack.c.bf16 %v232, %v229
  %v271 = vpack.c.bf16 %v240, %v237
  %v288 = vunpack.c.l.b16 %v248
  %v289 = vunpack.c.l.b16 %v249
  %v290 = vunpack.c.l.b16 %v250
  %v291 = vunpack.c.l.b16 %v251
  %v292 = vunpack.c.l.b16 %v252
  %v293 = vunpack.c.l.b16 %v253
  %v294 = vunpack.c.l.b16 %v254
  %v295 = vunpack.c.l.b16 %v255
  %v296 = vunpack.c.l.b16 %v256
  %v297 = vunpack.c.l.b16 %v257
  %v298 = vunpack.c.l.b16 %v258
  %v299 = vunpack.c.l.b16 %v259
  %v300 = vunpack.c.l.b16 %v260
  %v301 = vunpack.c.l.b16 %v261
  %v302 = vunpack.c.l.b16 %v262
  %v303 = vunpack.c.l.b16 %v263
  %v304 = vpack.c.b16 %v289, %v288
  %v305 = vpack.c.b16 %v291, %v290
  %v306 = vpack.c.b16 %v293, %v292
  %v307 = vpack.c.b16 %v295, %v294
  %v308 = vpack.c.b16 %v297, %v296
  %v309 = vpack.c.b16 %v299, %v298
  %v310 = vpack.c.b16 %v301, %v300
  %v311 = vpack.c.b16 %v303, %v302
  %v320 = vld [vmem:[%s2] sm:$0xf]
  %v321 = vld [vmem:[%s2 + $0x4] sm:$0xf]
  %v322 = vld [vmem:[%s2 + $0x8] sm:$0xf]
  %v323 = vld [vmem:[%s2 + $0xc] sm:$0xf]
  %v324 = vld [vmem:[%s2 + $0x10] sm:$0xf]
  %v325 = vld [vmem:[%s2 + $0x14] sm:$0xf]
  %v326 = vld [vmem:[%s2 + $0x18] sm:$0xf]
  %v327 = vld [vmem:[%s2 + $0x1c] sm:$0xf]
  %v328 = vld [vmem:[%s2 + $0x20] sm:$0xf]
  %v329 = vld [vmem:[%s2 + $0x24] sm:$0xf]
  %v330 = vld [vmem:[%s2 + $0x28] sm:$0xf]
  %v331 = vld [vmem:[%s2 + $0x2c] sm:$0xf]
  %v332 = vld [vmem:[%s2 + $0x30] sm:$0xf]
  %v333 = vld [vmem:[%s2 + $0x34] sm:$0xf]
  %v334 = vld [vmem:[%s2 + $0x38] sm:$0xf]
  %v335 = vld [vmem:[%s2 + $0x3c] sm:$0xf]
  %v336 = vld [vmem:[%s2 + $0x40] sm:$0xf]
  %v337 = vld [vmem:[%s2 + $0x44] sm:$0xf]
  %v338 = vld [vmem:[%s2 + $0x48] sm:$0xf]
  %v339 = vld [vmem:[%s2 + $0x4c] sm:$0xf]
  %v340 = vld [vmem:[%s2 + $0x50] sm:$0xf]
  %v341 = vld [vmem:[%s2 + $0x54] sm:$0xf]
  %v342 = vld [vmem:[%s2 + $0x58] sm:$0xf]
  %v343 = vld [vmem:[%s2 + $0x5c] sm:$0xf]
  %v344 = vld [vmem:[%s2 + $0x60] sm:$0xf]
  %v345 = vld [vmem:[%s2 + $0x64] sm:$0xf]
  %v346 = vld [vmem:[%s2 + $0x68] sm:$0xf]
  %v347 = vld [vmem:[%s2 + $0x6c] sm:$0xf]
  %v348 = vld [vmem:[%s2 + $0x70] sm:$0xf]
  %v349 = vld [vmem:[%s2 + $0x74] sm:$0xf]
  %v350 = vld [vmem:[%s2 + $0x78] sm:$0xf]
  %v351 = vld [vmem:[%s2 + $0x7c] sm:$0xf]
  %v352 = vld [vmem:[%s3] sm:$0x1]
  %v354 = vlaneseq
  %v355 = vshrl.u32 %v354, 7
  %v356 = vsub.s32 0, %v355
  %v357 = vrot.slane %v352, %v356
  %v391 = vunpack.c.l.b16 %v320
  %v392 = vunpack.c.l.b16 %v321
  %v393 = vunpack.c.l.b16 %v322
  %v394 = vunpack.c.l.b16 %v323
  %v395 = vunpack.c.l.b16 %v324
  %v396 = vunpack.c.l.b16 %v325
  %v397 = vunpack.c.l.b16 %v326
  %v398 = vunpack.c.l.b16 %v327
  %v399 = vunpack.c.l.b16 %v328
  %v400 = vunpack.c.l.b16 %v329
  %v401 = vunpack.c.l.b16 %v330
  %v402 = vunpack.c.l.b16 %v331
  %v403 = vunpack.c.l.b16 %v332
  %v404 = vunpack.c.l.b16 %v333
  %v405 = vunpack.c.l.b16 %v334
  %v406 = vunpack.c.l.b16 %v335
  %v407 = vunpack.c.l.b16 %v336
  %v408 = vunpack.c.l.b16 %v337
  %v409 = vunpack.c.l.b16 %v338
  %v410 = vunpack.c.l.b16 %v339
  %v411 = vunpack.c.l.b16 %v340
  %v412 = vunpack.c.l.b16 %v341
  %v413 = vunpack.c.l.b16 %v342
  %v414 = vunpack.c.l.b16 %v343
  %v415 = vunpack.c.l.b16 %v344
  %v416 = vunpack.c.l.b16 %v345
  %v417 = vunpack.c.l.b16 %v346
  %v418 = vunpack.c.l.b16 %v347
  %v419 = vunpack.c.l.b16 %v348
  %v420 = vunpack.c.l.b16 %v349
  %v421 = vunpack.c.l.b16 %v350
  %v422 = vunpack.c.l.b16 %v351
  %v423 = vpack.c.b16 %v392, %v391
  %v424 = vpack.c.b16 %v394, %v393
  %v425 = vpack.c.b16 %v396, %v395
  %v426 = vpack.c.b16 %v398, %v397
  %v427 = vpack.c.b16 %v400, %v399
  %v428 = vpack.c.b16 %v402, %v401
  %v429 = vpack.c.b16 %v404, %v403
  %v430 = vpack.c.b16 %v406, %v405
  %v431 = vpack.c.b16 %v408, %v407
  %v432 = vpack.c.b16 %v410, %v409
  %v433 = vpack.c.b16 %v412, %v411
  %v434 = vpack.c.b16 %v414, %v413
  %v435 = vpack.c.b16 %v416, %v415
  %v436 = vpack.c.b16 %v418, %v417
  %v437 = vpack.c.b16 %v420, %v419
  %v438 = vpack.c.b16 %v422, %v421
  %455 = vmatprep.subr.bf16.mxu0 0
  %456 = vmatpush1.bf16.msra.mxu0 %v423
  %457 = vmatprep.subr.bf16.mxu0 0
  %458 = vmatpush1.bf16.msra.mxu0 %v424
  %459 = vmatprep.subr.bf16.mxu0 0
  %460 = vmatpush1.bf16.msra.mxu0 %v425
  %461 = vmatprep.subr.bf16.mxu0 0
  %462 = vmatpush1.bf16.msra.mxu0 %v426
  %463 = vmatprep.subr.bf16.mxu0 0
  %464 = vmatpush1.bf16.msra.mxu0 %v427
  %465 = vmatprep.subr.bf16.mxu0 0
  %466 = vmatpush1.bf16.msra.mxu0 %v428
  %467 = vmatprep.subr.bf16.mxu0 0
  %468 = vmatpush1.bf16.msra.mxu0 %v429
  %469 = vmatprep.subr.bf16.mxu0 0
  %470 = vmatpush1.bf16.msra.mxu0 %v430
  %471 = vmatprep.subr.bf16.mxu0 0
  %472 = vmatpush1.bf16.msra.mxu0 %v431
  %473 = vmatprep.subr.bf16.mxu0 0
  %474 = vmatpush1.bf16.msra.mxu0 %v432
  %475 = vmatprep.subr.bf16.mxu0 0
  %476 = vmatpush1.bf16.msra.mxu0 %v433
  %477 = vmatprep.subr.bf16.mxu0 0
  %478 = vmatpush1.bf16.msra.mxu0 %v434
  %479 = vmatprep.subr.bf16.mxu0 0
  %480 = vmatpush1.bf16.msra.mxu0 %v435
  %481 = vmatprep.subr.bf16.mxu0 0
  %482 = vmatpush1.bf16.msra.mxu0 %v436
  %483 = vmatprep.subr.bf16.mxu0 0
  %484 = vmatpush1.bf16.msra.mxu0 %v437
  %485 = vmatprep.subr.bf16.mxu0 0
  %486 = vmatpush1.bf16.msra.mxu0 %v438
  %487 = vmatprep.mubr.bf16.mxu0 %v304
  %488 = vmatmul.mubr.bf16.gmra.mrb[0].mxu0 %v264
  %v489 = vpop.f32.mrb[0].mxu0
  %v490 = vadd.f32 %v357, %v489
  %v491 = vpop.f32.mrb[0].mxu0
  %v492 = vpop.f32.mrb[0].mxu0
  %v493 = vadd.f32 %v357, %v492
  %v494 = vpop.f32.mrb[0].mxu0
  %495 = vmatprep.mubr.bf16.mxu0 %v305
  %496 = vmatmul.mubr.bf16.gmra.mrb[0].mxu0 %v265
  %v497 = vpop.f32.mrb[0].mxu0
  %v498 = vadd.f32 %v357, %v497
  %v499 = vpop.f32.mrb[0].mxu0
  %v500 = vpop.f32.mrb[0].mxu0
  %v501 = vadd.f32 %v357, %v500
  %v502 = vpop.f32.mrb[0].mxu0
  %503 = vmatprep.mubr.bf16.mxu0 %v306
  %504 = vmatmul.mubr.bf16.gmra.mrb[0].mxu0 %v266
  %v505 = vpop.f32.mrb[0].mxu0
  %v506 = vadd.f32 %v357, %v505
  %v507 = vpop.f32.mrb[0].mxu0
  %v508 = vpop.f32.mrb[0].mxu0
  %v509 = vadd.f32 %v357, %v508
  %v510 = vpop.f32.mrb[0].mxu0
  %511 = vmatprep.mubr.bf16.mxu0 %v307
  %512 = vmatmul.mubr.bf16.gmra.mrb[0].mxu0 %v267
  %v513 = vpop.f32.mrb[0].mxu0
  %v514 = vadd.f32 %v357, %v513
  %v515 = vpop.f32.mrb[0].mxu0
  %v516 = vpop.f32.mrb[0].mxu0
  %v517 = vadd.f32 %v357, %v516
  %v518 = vpop.f32.mrb[0].mxu0
  %519 = vmatprep.mubr.bf16.mxu0 %v308
  %520 = vmatmul.mubr.bf16.gmra.mrb[0].mxu0 %v268
  %v521 = vpop.f32.mrb[0].mxu0
  %v522 = vadd.f32 %v357, %v521
  %v523 = vpop.f32.mrb[0].mxu0
  %v524 = vpop.f32.mrb[0].mxu0
  %v525 = vadd.f32 %v357, %v524
  %v526 = vpop.f32.mrb[0].mxu0
  %527 = vmatprep.mubr.bf16.mxu0 %v309
  %528 = vmatmul.mubr.bf16.gmra.mrb[0].mxu0 %v269
  %v529 = vpop.f32.mrb[0].mxu0
  %v530 = vadd.f32 %v357, %v529
  %v531 = vpop.f32.mrb[0].mxu0
  %v532 = vpop.f32.mrb[0].mxu0
  %v533 = vadd.f32 %v357, %v532
  %v534 = vpop.f32.mrb[0].mxu0
  %535 = vmatprep.mubr.bf16.mxu0 %v310
  %536 = vmatmul.mubr.bf16.gmra.mrb[0].mxu0 %v270
  %v537 = vpop.f32.mrb[0].mxu0
  %v538 = vadd.f32 %v357, %v537
  %v539 = vpop.f32.mrb[0].mxu0
  %v540 = vpop.f32.mrb[0].mxu0
  %v541 = vadd.f32 %v357, %v540
  %v542 = vpop.f32.mrb[0].mxu0
  %543 = vmatprep.mubr.bf16.mxu0 %v311
  %544 = vmatmul.mubr.bf16.gmra.mrb[0].mxu0 %v271
  %v545 = vpop.f32.mrb[0].mxu0
  %v546 = vadd.f32 %v357, %v545
  %v547 = vpop.f32.mrb[0].mxu0
  %v548 = vpop.f32.mrb[0].mxu0
  %v549 = vadd.f32 %v357, %v548
  %v550 = vpop.f32.mrb[0].mxu0
  %551 = vdwg.mxu0
  %v552 = vmax.f32 %v490, 0.0
  %v553 = vmax.f32 %v493, 0.0
  %v554 = vmax.f32 %v498, 0.0
  %v555 = vmax.f32 %v501, 0.0
  %v556 = vmax.f32 %v506, 0.0
  %v557 = vmax.f32 %v509, 0.0
  %v558 = vmax.f32 %v514, 0.0
  %v559 = vmax.f32 %v517, 0.0
  %v560 = vmax.f32 %v522, 0.0
  %v561 = vmax.f32 %v525, 0.0
  %v562 = vmax.f32 %v530, 0.0
  %v563 = vmax.f32 %v533, 0.0
  %v564 = vmax.f32 %v538, 0.0
  %v565 = vmax.f32 %v541, 0.0
  %v566 = vmax.f32 %v546, 0.0
  %v567 = vmax.f32 %v549, 0.0
  %v568 = vpack.c.bf16 %v553, %v552
  %v569 = vpack.c.bf16 %v555, %v554
  %v570 = vpack.c.bf16 %v557, %v556
  %v571 = vpack.c.bf16 %v559, %v558
  %v572 = vpack.c.bf16 %v561, %v560
  %v573 = vpack.c.bf16 %v563, %v562
  %v574 = vpack.c.bf16 %v565, %v564
  %v575 = vpack.c.bf16 %v567, %v566
  %v584 = vunpack.c.l.b16 %v568
  %v585 = vunpack.c.h.b16 %v568
  %v586 = vunpack.c.l.b16 %v569
  %v587 = vunpack.c.h.b16 %v569
  %v588 = vunpack.c.l.b16 %v570
  %v589 = vunpack.c.h.b16 %v570
  %v590 = vunpack.c.l.b16 %v571
  %v591 = vunpack.c.h.b16 %v571
  %v592 = vunpack.c.l.b16 %v572
  %v593 = vunpack.c.h.b16 %v572
  %v594 = vunpack.c.l.b16 %v573
  %v595 = vunpack.c.h.b16 %v573
  %v596 = vunpack.c.l.b16 %v574
  %v597 = vunpack.c.h.b16 %v574
  %v598 = vunpack.c.l.b16 %v575
  %v599 = vunpack.c.h.b16 %v575
  %v600 = vpack.c.b16 %v584, %v584
  %v601 = vpack.c.b16 %v585, %v585
  %v602 = vpack.c.b16 %v586, %v586
  %v603 = vpack.c.b16 %v587, %v587
  %v604 = vpack.c.b16 %v588, %v588
  %v605 = vpack.c.b16 %v589, %v589
  %v606 = vpack.c.b16 %v590, %v590
  %v607 = vpack.c.b16 %v591, %v591
  %v608 = vpack.c.b16 %v592, %v592
  %v609 = vpack.c.b16 %v593, %v593
  %v610 = vpack.c.b16 %v594, %v594
  %v611 = vpack.c.b16 %v595, %v595
  %v612 = vpack.c.b16 %v596, %v596
  %v613 = vpack.c.b16 %v597, %v597
  %v614 = vpack.c.b16 %v598, %v598
  %v615 = vpack.c.b16 %v599, %v599
  %632 = vst [vmem:[%s4] sm:$0xf] %v600
  %633 = vst [vmem:[%s4 + $0x4] sm:$0xf] %v601
  %634 = vst [vmem:[%s4 + $0x8] sm:$0xf] %v602
  %635 = vst [vmem:[%s4 + $0xc] sm:$0xf] %v603
  %636 = vst [vmem:[%s4 + $0x10] sm:$0xf] %v604
  %637 = vst [vmem:[%s4 + $0x14] sm:$0xf] %v605
  %638 = vst [vmem:[%s4 + $0x18] sm:$0xf] %v606
  %639 = vst [vmem:[%s4 + $0x1c] sm:$0xf] %v607
  %640 = vst [vmem:[%s4 + $0x20] sm:$0xf] %v608
  %641 = vst [vmem:[%s4 + $0x24] sm:$0xf] %v609
  %642 = vst [vmem:[%s4 + $0x28] sm:$0xf] %v610
  %643 = vst [vmem:[%s4 + $0x2c] sm:$0xf] %v611
  %644 = vst [vmem:[%s4 + $0x30] sm:$0xf] %v612
  %645 = vst [vmem:[%s4 + $0x34] sm:$0xf] %v613
  %646 = vst [vmem:[%s4 + $0x38] sm:$0xf] %v614
  %647 = vst [vmem:[%s4 + $0x3c] sm:$0xf] %v615
  // Predicated region
  $region18: #{graphsage_forward.3} parent=0 // pred_check
    _
  $region19: #{graphsage_forward.3} parent=0 // pred_check_branch
    %649 = sbr.rel (0) target = $region21
  $region20: #{graphsage_forward.3} parent=0 // pred_region
    _
  $region21: #{graphsage_forward.3} parent=0 // pred_fallthru
    _
  // Predicated region
  $region22: #{graphsage_forward.3} parent=0 // pred_check
    _
  $region23: #{graphsage_forward.3} parent=0 // pred_check_branch
    %651 = sbr.rel (0) target = $region25
  $region24: #{graphsage_forward.3} parent=0 // pred_region
    _
  $region25: #{graphsage_forward.3} parent=0 // pred_fallthru
    _

// kernel: graphsage_forward.4
$region0: #{graphsage_forward.4}
  #allocation0 [shape = 'u32[]', space=smem, size = 0x4, offset = 0x4, fixed_abs, tag = 'smem constant byte address 0x4 - core index']
  #allocation1 [shape = 'u32[144,128]{1,0:T(1,128)}', space=vmem, size = 0x12000, scoped, tag = 'internal scratch']
  %s0 = inlined_call_operand.vmem [shape: bf16[128,128], index: 0, kind: input, shape index: {}]
  %s1 = inlined_call_operand.vmem [shape: bf16[128,128], index: 1, kind: input, shape index: {}]
  %s2 = inlined_call_operand.vmem [shape: bf16[256,128], index: 2, kind: input, shape index: {}]
  %s3 = inlined_call_operand.vmem [shape: f32[1,128], index: 3, kind: input, shape index: {}]
  %s4 = inlined_call_operand.vmem [shape: f32[128,128], index: 4, kind: output, shape index: {}]
  %s5 = sld [smem:[#allocation0]]
  $region26: #{graphsage_forward.4} parent=0
    _
  %s7 = ssub.s32 1, %s5
  %s8 = scalar_select 0, %s7, %s5
  // Predicated region
  $region2: #{graphsage_forward.4} parent=0 // pred_check
    _
  $region3: #{graphsage_forward.4} parent=0 // pred_check_branch
    %10 = sbr.rel (0) target = $region5
  $region4: #{graphsage_forward.4} parent=0 // pred_region
    _
  $region5: #{graphsage_forward.4} parent=0 // pred_fallthru
    _
  // Predicated region
  $region6: #{graphsage_forward.4} parent=0 // pred_check
    _
  $region7: #{graphsage_forward.4} parent=0 // pred_check_branch
    %12 = sbr.rel (0) target = $region9
  $region8: #{graphsage_forward.4} parent=0 // pred_region
    _
  $region9: #{graphsage_forward.4} parent=0 // pred_fallthru
    _
  // Predicated region
  $region10: #{graphsage_forward.4} parent=0 // pred_check
    _
  $region11: #{graphsage_forward.4} parent=0 // pred_check_branch
    %14 = sbr.rel (0) target = $region13
  $region12: #{graphsage_forward.4} parent=0 // pred_region
    _
  $region13: #{graphsage_forward.4} parent=0 // pred_fallthru
    _
  // Predicated region
  $region14: #{graphsage_forward.4} parent=0 // pred_check
    _
  $region15: #{graphsage_forward.4} parent=0 // pred_check_branch
    %16 = sbr.rel (0) target = $region17
  $region16: #{graphsage_forward.4} parent=0 // pred_region
    _
  $region17: #{graphsage_forward.4} parent=0 // pred_fallthru
    _
  %v18 = vld [vmem:[%s0] sm:$0xf]
  %v19 = vld [vmem:[%s0 + $0x4] sm:$0xf]
  %v20 = vld [vmem:[%s0 + $0x8] sm:$0xf]
  %v21 = vld [vmem:[%s0 + $0xc] sm:$0xf]
  %v22 = vld [vmem:[%s0 + $0x10] sm:$0xf]
  %v23 = vld [vmem:[%s0 + $0x14] sm:$0xf]
  %v24 = vld [vmem:[%s0 + $0x18] sm:$0xf]
  %v25 = vld [vmem:[%s0 + $0x1c] sm:$0xf]
  %v26 = vld [vmem:[%s0 + $0x20] sm:$0xf]
  %v27 = vld [vmem:[%s0 + $0x24] sm:$0xf]
  %v28 = vld [vmem:[%s0 + $0x28] sm:$0xf]
  %v29 = vld [vmem:[%s0 + $0x2c] sm:$0xf]
  %v30 = vld [vmem:[%s0 + $0x30] sm:$0xf]
  %v31 = vld [vmem:[%s0 + $0x34] sm:$0xf]
  %v32 = vld [vmem:[%s0 + $0x38] sm:$0xf]
  %v33 = vld [vmem:[%s0 + $0x3c] sm:$0xf]
  %v34 = vld [vmem:[%s1] sm:$0xf]
  %v35 = vld [vmem:[%s1 + $0x4] sm:$0xf]
  %v36 = vld [vmem:[%s1 + $0x8] sm:$0xf]
  %v37 = vld [vmem:[%s1 + $0xc] sm:$0xf]
  %v38 = vld [vmem:[%s1 + $0x10] sm:$0xf]
  %v39 = vld [vmem:[%s1 + $0x14] sm:$0xf]
  %v40 = vld [vmem:[%s1 + $0x18] sm:$0xf]
  %v41 = vld [vmem:[%s1 + $0x1c] sm:$0xf]
  %v42 = vld [vmem:[%s1 + $0x20] sm:$0xf]
  %v43 = vld [vmem:[%s1 + $0x24] sm:$0xf]
  %v44 = vld [vmem:[%s1 + $0x28] sm:$0xf]
  %v45 = vld [vmem:[%s1 + $0x2c] sm:$0xf]
  %v46 = vld [vmem:[%s1 + $0x30] sm:$0xf]
  %v47 = vld [vmem:[%s1 + $0x34] sm:$0xf]
  %v48 = vld [vmem:[%s1 + $0x38] sm:$0xf]
  %v49 = vld [vmem:[%s1 + $0x3c] sm:$0xf]
  %v66 = vunpack.c.l.b16 %v18
  %v67 = vunpack.c.l.b16 %v19
  %v68 = vunpack.c.l.b16 %v20
  %v69 = vunpack.c.l.b16 %v21
  %v70 = vunpack.c.l.b16 %v22
  %v71 = vunpack.c.l.b16 %v23
  %v72 = vunpack.c.l.b16 %v24
  %v73 = vunpack.c.l.b16 %v25
  %v74 = vunpack.c.l.b16 %v26
  %v75 = vunpack.c.l.b16 %v27
  %v76 = vunpack.c.l.b16 %v28
  %v77 = vunpack.c.l.b16 %v29
  %v78 = vunpack.c.l.b16 %v30
  %v79 = vunpack.c.l.b16 %v31
  %v80 = vunpack.c.l.b16 %v32
  %v81 = vunpack.c.l.b16 %v33
  %v82 = vpack.c.b16 %v67, %v66
  %v83 = vpack.c.b16 %v69, %v68
  %v84 = vpack.c.b16 %v71, %v70
  %v85 = vpack.c.b16 %v73, %v72
  %v86 = vpack.c.b16 %v75, %v74
  %v87 = vpack.c.b16 %v77, %v76
  %v88 = vpack.c.b16 %v79, %v78
  %v89 = vpack.c.b16 %v81, %v80
  %v114 = vunpack.c.l.b16 %v34
  %v115 = vunpack.c.l.b16 %v35
  %v116 = vunpack.c.l.b16 %v36
  %v117 = vunpack.c.l.b16 %v37
  %v118 = vunpack.c.l.b16 %v38
  %v119 = vunpack.c.l.b16 %v39
  %v120 = vunpack.c.l.b16 %v40
  %v121 = vunpack.c.l.b16 %v41
  %v122 = vunpack.c.l.b16 %v42
  %v123 = vunpack.c.l.b16 %v43
  %v124 = vunpack.c.l.b16 %v44
  %v125 = vunpack.c.l.b16 %v45
  %v126 = vunpack.c.l.b16 %v46
  %v127 = vunpack.c.l.b16 %v47
  %v128 = vunpack.c.l.b16 %v48
  %v129 = vunpack.c.l.b16 %v49
  %v130 = vpack.c.b16 %v115, %v114
  %v131 = vpack.c.b16 %v117, %v116
  %v132 = vpack.c.b16 %v119, %v118
  %v133 = vpack.c.b16 %v121, %v120
  %v134 = vpack.c.b16 %v123, %v122
  %v135 = vpack.c.b16 %v125, %v124
  %v136 = vpack.c.b16 %v127, %v126
  %v137 = vpack.c.b16 %v129, %v128
  %146 = vmatprep.subr.bf16.mxu0 0
  %147 = vmatpush1.bf16.msra.mxu0 %v130
  %148 = vmatprep.subr.bf16.mxu0 0
  %149 = vmatpush1.bf16.msra.mxu0 %v131
  %150 = vmatprep.subr.bf16.mxu0 0
  %151 = vmatpush1.bf16.msra.mxu0 %v132
  %152 = vmatprep.subr.bf16.mxu0 0
  %153 = vmatpush1.bf16.msra.mxu0 %v133
  %154 = vmatprep.subr.bf16.mxu0 0
  %155 = vmatpush1.bf16.msra.mxu0 %v134
  %156 = vmatprep.subr.bf16.mxu0 0
  %157 = vmatpush1.bf16.msra.mxu0 %v135
  %158 = vmatprep.subr.bf16.mxu0 0
  %159 = vmatpush1.bf16.msra.mxu0 %v136
  %160 = vmatprep.subr.bf16.mxu0 0
  %161 = vmatpush1.bf16.msra.mxu0 %v137
  %162 = vmatprep.subr.bf16.mxu0 0
  %163 = vmatpush1.bf16.msra.mxu0 0
  %164 = vmatprep.subr.bf16.mxu0 0
  %165 = vmatpush1.bf16.msra.mxu0 0
  %166 = vmatprep.subr.bf16.mxu0 0
  %167 = vmatpush1.bf16.msra.mxu0 0
  %168 = vmatprep.subr.bf16.mxu0 0
  %169 = vmatpush1.bf16.msra.mxu0 0
  %170 = vmatprep.subr.bf16.mxu0 0
  %171 = vmatpush1.bf16.msra.mxu0 0
  %172 = vmatprep.subr.bf16.mxu0 0
  %173 = vmatpush1.bf16.msra.mxu0 0
  %174 = vmatprep.subr.bf16.mxu0 0
  %175 = vmatpush1.bf16.msra.mxu0 0
  %176 = vmatprep.subr.bf16.mxu0 0
  %177 = vmatpush1.bf16.msra.mxu0 0
  %178 = vmatprep.mubr.bf16.mxu0 0
  %179 = vmatmul.mubr.bf16.gmra.mrb[0].mxu0 %v82
  %v180 = vpop.f32.mrb[0].mxu0
  %v181 = vadd.f32 0.0, %v180
  %v182 = vpop.f32.mrb[0].mxu0
  %v183 = vpop.f32.mrb[0].mxu0
  %v184 = vadd.f32 0.0, %v183
  %v185 = vpop.f32.mrb[0].mxu0
  %186 = vmatprep.mubr.bf16.mxu0 0
  %187 = vmatmul.mubr.bf16.gmra.mrb[0].mxu0 %v83
  %v188 = vpop.f32.mrb[0].mxu0
  %v189 = vadd.f32 0.0, %v188
  %v190 = vpop.f32.mrb[0].mxu0
  %v191 = vpop.f32.mrb[0].mxu0
  %v192 = vadd.f32 0.0, %v191
  %v193 = vpop.f32.mrb[0].mxu0
  %194 = vmatprep.mubr.bf16.mxu0 0
  %195 = vmatmul.mubr.bf16.gmra.mrb[0].mxu0 %v84
  %v196 = vpop.f32.mrb[0].mxu0
  %v197 = vadd.f32 0.0, %v196
  %v198 = vpop.f32.mrb[0].mxu0
  %v199 = vpop.f32.mrb[0].mxu0
  %v200 = vadd.f32 0.0, %v199
  %v201 = vpop.f32.mrb[0].mxu0
  %202 = vmatprep.mubr.bf16.mxu0 0
  %203 = vmatmul.mubr.bf16.gmra.mrb[0].mxu0 %v85
  %v204 = vpop.f32.mrb[0].mxu0
  %v205 = vadd.f32 0.0, %v204
  %v206 = vpop.f32.mrb[0].mxu0
  %v207 = vpop.f32.mrb[0].mxu0
  %v208 = vadd.f32 0.0, %v207
  %v209 = vpop.f32.mrb[0].mxu0
  %210 = vmatprep.mubr.bf16.mxu0 0
  %211 = vmatmul.mubr.bf16.gmra.mrb[0].mxu0 %v86
  %v212 = vpop.f32.mrb[0].mxu0
  %v213 = vadd.f32 0.0, %v212
  %v214 = vpop.f32.mrb[0].mxu0
  %v215 = vpop.f32.mrb[0].mxu0
  %v216 = vadd.f32 0.0, %v215
  %v217 = vpop.f32.mrb[0].mxu0
  %218 = vmatprep.mubr.bf16.mxu0 0
  %219 = vmatmul.mubr.bf16.gmra.mrb[0].mxu0 %v87
  %v220 = vpop.f32.mrb[0].mxu0
  %v221 = vadd.f32 0.0, %v220
  %v222 = vpop.f32.mrb[0].mxu0
  %v223 = vpop.f32.mrb[0].mxu0
  %v224 = vadd.f32 0.0, %v223
  %v225 = vpop.f32.mrb[0].mxu0
  %226 = vmatprep.mubr.bf16.mxu0 0
  %227 = vmatmul.mubr.bf16.gmra.mrb[0].mxu0 %v88
  %v228 = vpop.f32.mrb[0].mxu0
  %v229 = vadd.f32 0.0, %v228
  %v230 = vpop.f32.mrb[0].mxu0
  %v231 = vpop.f32.mrb[0].mxu0
  %v232 = vadd.f32 0.0, %v231
  %v233 = vpop.f32.mrb[0].mxu0
  %234 = vmatprep.mubr.bf16.mxu0 0
  %235 = vmatmul.mubr.bf16.gmra.mrb[0].mxu0 %v89
  %v236 = vpop.f32.mrb[0].mxu0
  %v237 = vadd.f32 0.0, %v236
  %v238 = vpop.f32.mrb[0].mxu0
  %v239 = vpop.f32.mrb[0].mxu0
  %v240 = vadd.f32 0.0, %v239
  %v241 = vpop.f32.mrb[0].mxu0
  %242 = vdwg.mxu0
  %s243 = smul.u32 0, 128
  %s244 = sshra.s32 %s243, 3
  %s245 = sand.u32 %s243, 7
  %s246 = smul.addr %s244, 4
  %s247 = scalar_lea.vmem %s1, %s246
  %v248 = vld [vmem:[%s247] sm:$0xf]
  %v249 = vld [vmem:[%s247 + $0x4] sm:$0xf]
  %v250 = vld [vmem:[%s247 + $0x8] sm:$0xf]
  %v251 = vld [vmem:[%s247 + $0xc] sm:$0xf]
  %v252 = vld [vmem:[%s247 + $0x10] sm:$0xf]
  %v253 = vld [vmem:[%s247 + $0x14] sm:$0xf]
  %v254 = vld [vmem:[%s247 + $0x18] sm:$0xf]
  %v255 = vld [vmem:[%s247 + $0x1c] sm:$0xf]
  %v256 = vld [vmem:[%s247 + $0x20] sm:$0xf]
  %v257 = vld [vmem:[%s247 + $0x24] sm:$0xf]
  %v258 = vld [vmem:[%s247 + $0x28] sm:$0xf]
  %v259 = vld [vmem:[%s247 + $0x2c] sm:$0xf]
  %v260 = vld [vmem:[%s247 + $0x30] sm:$0xf]
  %v261 = vld [vmem:[%s247 + $0x34] sm:$0xf]
  %v262 = vld [vmem:[%s247 + $0x38] sm:$0xf]
  %v263 = vld [vmem:[%s247 + $0x3c] sm:$0xf]
  %v264 = vpack.c.bf16 %v184, %v181
  %v265 = vpack.c.bf16 %v192, %v189
  %v266 = vpack.c.bf16 %v200, %v197
  %v267 = vpack.c.bf16 %v208, %v205
  %v268 = vpack.c.bf16 %v216, %v213
  %v269 = vpack.c.bf16 %v224, %v221
  %v270 = vpack.c.bf16 %v232, %v229
  %v271 = vpack.c.bf16 %v240, %v237
  %v288 = vunpack.c.l.b16 %v248
  %v289 = vunpack.c.l.b16 %v249
  %v290 = vunpack.c.l.b16 %v250
  %v291 = vunpack.c.l.b16 %v251
  %v292 = vunpack.c.l.b16 %v252
  %v293 = vunpack.c.l.b16 %v253
  %v294 = vunpack.c.l.b16 %v254
  %v295 = vunpack.c.l.b16 %v255
  %v296 = vunpack.c.l.b16 %v256
  %v297 = vunpack.c.l.b16 %v257
  %v298 = vunpack.c.l.b16 %v258
  %v299 = vunpack.c.l.b16 %v259
  %v300 = vunpack.c.l.b16 %v260
  %v301 = vunpack.c.l.b16 %v261
  %v302 = vunpack.c.l.b16 %v262
  %v303 = vunpack.c.l.b16 %v263
  %v304 = vpack.c.b16 %v289, %v288
  %v305 = vpack.c.b16 %v291, %v290
  %v306 = vpack.c.b16 %v293, %v292
  %v307 = vpack.c.b16 %v295, %v294
  %v308 = vpack.c.b16 %v297, %v296
  %v309 = vpack.c.b16 %v299, %v298
  %v310 = vpack.c.b16 %v301, %v300
  %v311 = vpack.c.b16 %v303, %v302
  %v320 = vld [vmem:[%s2] sm:$0xf]
  %v321 = vld [vmem:[%s2 + $0x4] sm:$0xf]
  %v322 = vld [vmem:[%s2 + $0x8] sm:$0xf]
  %v323 = vld [vmem:[%s2 + $0xc] sm:$0xf]
  %v324 = vld [vmem:[%s2 + $0x10] sm:$0xf]
  %v325 = vld [vmem:[%s2 + $0x14] sm:$0xf]
  %v326 = vld [vmem:[%s2 + $0x18] sm:$0xf]
  %v327 = vld [vmem:[%s2 + $0x1c] sm:$0xf]
  %v328 = vld [vmem:[%s2 + $0x20] sm:$0xf]
  %v329 = vld [vmem:[%s2 + $0x24] sm:$0xf]
  %v330 = vld [vmem:[%s2 + $0x28] sm:$0xf]
  %v331 = vld [vmem:[%s2 + $0x2c] sm:$0xf]
  %v332 = vld [vmem:[%s2 + $0x30] sm:$0xf]
  %v333 = vld [vmem:[%s2 + $0x34] sm:$0xf]
  %v334 = vld [vmem:[%s2 + $0x38] sm:$0xf]
  %v335 = vld [vmem:[%s2 + $0x3c] sm:$0xf]
  %v336 = vld [vmem:[%s2 + $0x40] sm:$0xf]
  %v337 = vld [vmem:[%s2 + $0x44] sm:$0xf]
  %v338 = vld [vmem:[%s2 + $0x48] sm:$0xf]
  %v339 = vld [vmem:[%s2 + $0x4c] sm:$0xf]
  %v340 = vld [vmem:[%s2 + $0x50] sm:$0xf]
  %v341 = vld [vmem:[%s2 + $0x54] sm:$0xf]
  %v342 = vld [vmem:[%s2 + $0x58] sm:$0xf]
  %v343 = vld [vmem:[%s2 + $0x5c] sm:$0xf]
  %v344 = vld [vmem:[%s2 + $0x60] sm:$0xf]
  %v345 = vld [vmem:[%s2 + $0x64] sm:$0xf]
  %v346 = vld [vmem:[%s2 + $0x68] sm:$0xf]
  %v347 = vld [vmem:[%s2 + $0x6c] sm:$0xf]
  %v348 = vld [vmem:[%s2 + $0x70] sm:$0xf]
  %v349 = vld [vmem:[%s2 + $0x74] sm:$0xf]
  %v350 = vld [vmem:[%s2 + $0x78] sm:$0xf]
  %v351 = vld [vmem:[%s2 + $0x7c] sm:$0xf]
  %v352 = vld [vmem:[%s3] sm:$0x1]
  %v354 = vlaneseq
  %v355 = vshrl.u32 %v354, 7
  %v356 = vsub.s32 0, %v355
  %v357 = vrot.slane %v352, %v356
  %v391 = vunpack.c.l.b16 %v320
  %v392 = vunpack.c.l.b16 %v321
  %v393 = vunpack.c.l.b16 %v322
  %v394 = vunpack.c.l.b16 %v323
  %v395 = vunpack.c.l.b16 %v324
  %v396 = vunpack.c.l.b16 %v325
  %v397 = vunpack.c.l.b16 %v326
  %v398 = vunpack.c.l.b16 %v327
  %v399 = vunpack.c.l.b16 %v328
  %v400 = vunpack.c.l.b16 %v329
  %v401 = vunpack.c.l.b16 %v330
  %v402 = vunpack.c.l.b16 %v331
  %v403 = vunpack.c.l.b16 %v332
  %v404 = vunpack.c.l.b16 %v333
  %v405 = vunpack.c.l.b16 %v334
  %v406 = vunpack.c.l.b16 %v335
  %v407 = vunpack.c.l.b16 %v336
  %v408 = vunpack.c.l.b16 %v337
  %v409 = vunpack.c.l.b16 %v338
  %v410 = vunpack.c.l.b16 %v339
  %v411 = vunpack.c.l.b16 %v340
  %v412 = vunpack.c.l.b16 %v341
  %v413 = vunpack.c.l.b16 %v342
  %v414 = vunpack.c.l.b16 %v343
  %v415 = vunpack.c.l.b16 %v344
  %v416 = vunpack.c.l.b16 %v345
  %v417 = vunpack.c.l.b16 %v346
  %v418 = vunpack.c.l.b16 %v347
  %v419 = vunpack.c.l.b16 %v348
  %v420 = vunpack.c.l.b16 %v349
  %v421 = vunpack.c.l.b16 %v350
  %v422 = vunpack.c.l.b16 %v351
  %v423 = vpack.c.b16 %v392, %v391
  %v424 = vpack.c.b16 %v394, %v393
  %v425 = vpack.c.b16 %v396, %v395
  %v426 = vpack.c.b16 %v398, %v397
  %v427 = vpack.c.b16 %v400, %v399
  %v428 = vpack.c.b16 %v402, %v401
  %v429 = vpack.c.b16 %v404, %v403
  %v430 = vpack.c.b16 %v406, %v405
  %v431 = vpack.c.b16 %v408, %v407
  %v432 = vpack.c.b16 %v410, %v409
  %v433 = vpack.c.b16 %v412, %v411
  %v434 = vpack.c.b16 %v414, %v413
  %v435 = vpack.c.b16 %v416, %v415
  %v436 = vpack.c.b16 %v418, %v417
  %v437 = vpack.c.b16 %v420, %v419
  %v438 = vpack.c.b16 %v422, %v421
  %455 = vmatprep.subr.bf16.mxu0 0
  %456 = vmatpush1.bf16.msra.mxu0 %v423
  %457 = vmatprep.subr.bf16.mxu0 0
  %458 = vmatpush1.bf16.msra.mxu0 %v424
  %459 = vmatprep.subr.bf16.mxu0 0
  %460 = vmatpush1.bf16.msra.mxu0 %v425
  %461 = vmatprep.subr.bf16.mxu0 0
  %462 = vmatpush1.bf16.msra.mxu0 %v426
  %463 = vmatprep.subr.bf16.mxu0 0
  %464 = vmatpush1.bf16.msra.mxu0 %v427
  %465 = vmatprep.subr.bf16.mxu0 0
  %466 = vmatpush1.bf16.msra.mxu0 %v428
  %467 = vmatprep.subr.bf16.mxu0 0
  %468 = vmatpush1.bf16.msra.mxu0 %v429
  %469 = vmatprep.subr.bf16.mxu0 0
  %470 = vmatpush1.bf16.msra.mxu0 %v430
  %471 = vmatprep.subr.bf16.mxu0 0
  %472 = vmatpush1.bf16.msra.mxu0 %v431
  %473 = vmatprep.subr.bf16.mxu0 0
  %474 = vmatpush1.bf16.msra.mxu0 %v432
  %475 = vmatprep.subr.bf16.mxu0 0
  %476 = vmatpush1.bf16.msra.mxu0 %v433
  %477 = vmatprep.subr.bf16.mxu0 0
  %478 = vmatpush1.bf16.msra.mxu0 %v434
  %479 = vmatprep.subr.bf16.mxu0 0
  %480 = vmatpush1.bf16.msra.mxu0 %v435
  %481 = vmatprep.subr.bf16.mxu0 0
  %482 = vmatpush1.bf16.msra.mxu0 %v436
  %483 = vmatprep.subr.bf16.mxu0 0
  %484 = vmatpush1.bf16.msra.mxu0 %v437
  %485 = vmatprep.subr.bf16.mxu0 0
  %486 = vmatpush1.bf16.msra.mxu0 %v438
  %487 = vmatprep.mubr.bf16.mxu0 %v304
  %488 = vmatmul.mubr.bf16.gmra.mrb[0].mxu0 %v264
  %v489 = vpop.f32.mrb[0].mxu0
  %v490 = vadd.f32 %v357, %v489
  %v491 = vpop.f32.mrb[0].mxu0
  %v492 = vpop.f32.mrb[0].mxu0
  %v493 = vadd.f32 %v357, %v492
  %v494 = vpop.f32.mrb[0].mxu0
  %495 = vmatprep.mubr.bf16.mxu0 %v305
  %496 = vmatmul.mubr.bf16.gmra.mrb[0].mxu0 %v265
  %v497 = vpop.f32.mrb[0].mxu0
  %v498 = vadd.f32 %v357, %v497
  %v499 = vpop.f32.mrb[0].mxu0
  %v500 = vpop.f32.mrb[0].mxu0
  %v501 = vadd.f32 %v357, %v500
  %v502 = vpop.f32.mrb[0].mxu0
  %503 = vmatprep.mubr.bf16.mxu0 %v306
  %504 = vmatmul.mubr.bf16.gmra.mrb[0].mxu0 %v266
  %v505 = vpop.f32.mrb[0].mxu0
  %v506 = vadd.f32 %v357, %v505
  %v507 = vpop.f32.mrb[0].mxu0
  %v508 = vpop.f32.mrb[0].mxu0
  %v509 = vadd.f32 %v357, %v508
  %v510 = vpop.f32.mrb[0].mxu0
  %511 = vmatprep.mubr.bf16.mxu0 %v307
  %512 = vmatmul.mubr.bf16.gmra.mrb[0].mxu0 %v267
  %v513 = vpop.f32.mrb[0].mxu0
  %v514 = vadd.f32 %v357, %v513
  %v515 = vpop.f32.mrb[0].mxu0
  %v516 = vpop.f32.mrb[0].mxu0
  %v517 = vadd.f32 %v357, %v516
  %v518 = vpop.f32.mrb[0].mxu0
  %519 = vmatprep.mubr.bf16.mxu0 %v308
  %520 = vmatmul.mubr.bf16.gmra.mrb[0].mxu0 %v268
  %v521 = vpop.f32.mrb[0].mxu0
  %v522 = vadd.f32 %v357, %v521
  %v523 = vpop.f32.mrb[0].mxu0
  %v524 = vpop.f32.mrb[0].mxu0
  %v525 = vadd.f32 %v357, %v524
  %v526 = vpop.f32.mrb[0].mxu0
  %527 = vmatprep.mubr.bf16.mxu0 %v309
  %528 = vmatmul.mubr.bf16.gmra.mrb[0].mxu0 %v269
  %v529 = vpop.f32.mrb[0].mxu0
  %v530 = vadd.f32 %v357, %v529
  %v531 = vpop.f32.mrb[0].mxu0
  %v532 = vpop.f32.mrb[0].mxu0
  %v533 = vadd.f32 %v357, %v532
  %v534 = vpop.f32.mrb[0].mxu0
  %535 = vmatprep.mubr.bf16.mxu0 %v310
  %536 = vmatmul.mubr.bf16.gmra.mrb[0].mxu0 %v270
  %v537 = vpop.f32.mrb[0].mxu0
  %v538 = vadd.f32 %v357, %v537
  %v539 = vpop.f32.mrb[0].mxu0
  %v540 = vpop.f32.mrb[0].mxu0
  %v541 = vadd.f32 %v357, %v540
  %v542 = vpop.f32.mrb[0].mxu0
  %543 = vmatprep.mubr.bf16.mxu0 %v311
  %544 = vmatmul.mubr.bf16.gmra.mrb[0].mxu0 %v271
  %v545 = vpop.f32.mrb[0].mxu0
  %v546 = vadd.f32 %v357, %v545
  %v547 = vpop.f32.mrb[0].mxu0
  %v548 = vpop.f32.mrb[0].mxu0
  %v549 = vadd.f32 %v357, %v548
  %v550 = vpop.f32.mrb[0].mxu0
  %551 = vdwg.mxu0
  %552 = vst [vmem:[%s4] sm:$0xff] %v490
  %553 = vst [vmem:[%s4 + $0x8] sm:$0xff] %v493
  %554 = vst [vmem:[%s4 + $0x10] sm:$0xff] %v498
  %555 = vst [vmem:[%s4 + $0x18] sm:$0xff] %v501
  %556 = vst [vmem:[%s4 + $0x20] sm:$0xff] %v506
  %557 = vst [vmem:[%s4 + $0x28] sm:$0xff] %v509
  %558 = vst [vmem:[%s4 + $0x30] sm:$0xff] %v514
  %559 = vst [vmem:[%s4 + $0x38] sm:$0xff] %v517
  %560 = vst [vmem:[%s4 + $0x40] sm:$0xff] %v522
  %561 = vst [vmem:[%s4 + $0x48] sm:$0xff] %v525
  %562 = vst [vmem:[%s4 + $0x50] sm:$0xff] %v530
  %563 = vst [vmem:[%s4 + $0x58] sm:$0xff] %v533
  %564 = vst [vmem:[%s4 + $0x60] sm:$0xff] %v538
  %565 = vst [vmem:[%s4 + $0x68] sm:$0xff] %v541
  %566 = vst [vmem:[%s4 + $0x70] sm:$0xff] %v546
  %567 = vst [vmem:[%s4 + $0x78] sm:$0xff] %v549
  // Predicated region
  $region18: #{graphsage_forward.4} parent=0 // pred_check
    _
  $region19: #{graphsage_forward.4} parent=0 // pred_check_branch
    %569 = sbr.rel (0) target = $region21
  $region20: #{graphsage_forward.4} parent=0 // pred_region
    _
  $region21: #{graphsage_forward.4} parent=0 // pred_fallthru
    _
  // Predicated region
  $region22: #{graphsage_forward.4} parent=0 // pred_check
    _
  $region23: #{graphsage_forward.4} parent=0 // pred_check_branch
    %571 = sbr.rel (0) target = $region25
  $region24: #{graphsage_forward.4} parent=0 // pred_region
    _
  $region25: #{graphsage_forward.4} parent=0 // pred_fallthru
    _

// kernel: graphsage_forward.5
$region0: #{graphsage_forward.5}
  #allocation0 [shape = 'u32[]', space=smem, size = 0x4, offset = 0x4, fixed_abs, tag = 'smem constant byte address 0x4 - core index']
  #allocation1 [shape = 'u32[144,128]{1,0:T(1,128)}', space=vmem, size = 0x12000, scoped, tag = 'internal scratch']
  %s0 = inlined_call_operand.vmem [shape: f32[8,128], index: 0, kind: input, shape index: {}]
  %s1 = inlined_call_operand.vmem [shape: f32[128,128], index: 1, kind: input, shape index: {}]
  %s2 = inlined_call_operand.vmem [shape: f32[8,128], index: 2, kind: output, shape index: {}]
  %s3 = sld [smem:[#allocation0]]
  $region22: #{graphsage_forward.5} parent=0
    _
  %s5 = ssub.s32 1, %s3
  %s6 = scalar_select 0, %s5, %s3
  // Predicated region
  $region2: #{graphsage_forward.5} parent=0 // pred_check
    _
  $region3: #{graphsage_forward.5} parent=0 // pred_check_branch
    %8 = sbr.rel (0) target = $region5
  $region4: #{graphsage_forward.5} parent=0 // pred_region
    _
  $region5: #{graphsage_forward.5} parent=0 // pred_fallthru
    _
  // Predicated region
  $region6: #{graphsage_forward.5} parent=0 // pred_check
    _
  $region7: #{graphsage_forward.5} parent=0 // pred_check_branch
    %10 = sbr.rel (0) target = $region9
  $region8: #{graphsage_forward.5} parent=0 // pred_region
    _
  $region9: #{graphsage_forward.5} parent=0 // pred_fallthru
    _
  %p11 = scmp.eq.s32.totalorder 0, 0
  // Predicated region
  $region10: #{graphsage_forward.5} parent=0 // pred_check
    %p12 = pneg %p11
  $region11: #{graphsage_forward.5} parent=0 // pred_check_branch
    %14 = sbr.rel (%p12) target = $region13
  $region12: #{graphsage_forward.5} parent=0 // pred_region
    %15 = vst [vmem:[%s2] sm:$0xff] 0.0
  $region13: #{graphsage_forward.5} parent=0 // pred_fallthru
    _
  %v16 = vld [vmem:[%s2] sm:$0xff]
  %v17 = vld [vmem:[%s0] sm:$0xff]
  %v18 = vld [vmem:[%s1] sm:$0xff]
  %v19 = vld [vmem:[%s1 + $0x8] sm:$0xff]
  %v20 = vld [vmem:[%s1 + $0x10] sm:$0xff]
  %v21 = vld [vmem:[%s1 + $0x18] sm:$0xff]
  %v22 = vld [vmem:[%s1 + $0x20] sm:$0xff]
  %v23 = vld [vmem:[%s1 + $0x28] sm:$0xff]
  %v24 = vld [vmem:[%s1 + $0x30] sm:$0xff]
  %v25 = vld [vmem:[%s1 + $0x38] sm:$0xff]
  %v26 = vld [vmem:[%s1 + $0x40] sm:$0xff]
  %v27 = vld [vmem:[%s1 + $0x48] sm:$0xff]
  %v28 = vld [vmem:[%s1 + $0x50] sm:$0xff]
  %v29 = vld [vmem:[%s1 + $0x58] sm:$0xff]
  %v30 = vld [vmem:[%s1 + $0x60] sm:$0xff]
  %v31 = vld [vmem:[%s1 + $0x68] sm:$0xff]
  %v32 = vld [vmem:[%s1 + $0x70] sm:$0xff]
  %v33 = vld [vmem:[%s1 + $0x78] sm:$0xff]
  %34 = vmatprep.subr.mxu0 0.0
  %35 = vmatpush1.msra.mxu0 %v18
  %36 = vmatprep.subr.mxu0 0.0
  %37 = vmatpush1.msra.mxu0 %v19
  %38 = vmatprep.subr.mxu0 0.0
  %39 = vmatpush1.msra.mxu0 %v20
  %40 = vmatprep.subr.mxu0 0.0
  %41 = vmatpush1.msra.mxu0 %v21
  %42 = vmatprep.subr.mxu0 0.0
  %43 = vmatpush1.msra.mxu0 %v22
  %44 = vmatprep.subr.mxu0 0.0
  %45 = vmatpush1.msra.mxu0 %v23
  %46 = vmatprep.subr.mxu0 0.0
  %47 = vmatpush1.msra.mxu0 %v24
  %48 = vmatprep.subr.mxu0 0.0
  %49 = vmatpush1.msra.mxu0 %v25
  %50 = vmatprep.subr.mxu0 0.0
  %51 = vmatpush1.msra.mxu0 %v26
  %52 = vmatprep.subr.mxu0 0.0
  %53 = vmatpush1.msra.mxu0 %v27
  %54 = vmatprep.subr.mxu0 0.0
  %55 = vmatpush1.msra.mxu0 %v28
  %56 = vmatprep.subr.mxu0 0.0
  %57 = vmatpush1.msra.mxu0 %v29
  %58 = vmatprep.subr.mxu0 0.0
  %59 = vmatpush1.msra.mxu0 %v30
  %60 = vmatprep.subr.mxu0 0.0
  %61 = vmatpush1.msra.mxu0 %v31
  %62 = vmatprep.subr.mxu0 0.0
  %63 = vmatpush1.msra.mxu0 %v32
  %64 = vmatprep.subr.mxu0 0.0
  %65 = vmatpush1.msra.mxu0 %v33
  %66 = vmatprep.subr.mxu0 0.0
  %67 = vmatpush1.msra.mxu0 0.0
  %68 = vmatprep.subr.mxu0 0.0
  %69 = vmatpush1.msra.mxu0 0.0
  %70 = vmatprep.subr.mxu0 0.0
  %71 = vmatpush1.msra.mxu0 0.0
  %72 = vmatprep.subr.mxu0 0.0
  %73 = vmatpush1.msra.mxu0 0.0
  %74 = vmatprep.subr.mxu0 0.0
  %75 = vmatpush1.msra.mxu0 0.0
  %76 = vmatprep.subr.mxu0 0.0
  %77 = vmatpush1.msra.mxu0 0.0
  %78 = vmatprep.subr.mxu0 0.0
  %79 = vmatpush1.msra.mxu0 0.0
  %80 = vmatprep.subr.mxu0 0.0
  %81 = vmatpush1.msra.mxu0 0.0
  %82 = vmatprep.subr.mxu0 0.0
  %83 = vmatpush1.msra.mxu0 0.0
  %84 = vmatprep.subr.mxu0 0.0
  %85 = vmatpush1.msra.mxu0 0.0
  %86 = vmatprep.subr.mxu0 0.0
  %87 = vmatpush1.msra.mxu0 0.0
  %88 = vmatprep.subr.mxu0 0.0
  %89 = vmatpush1.msra.mxu0 0.0
  %90 = vmatprep.subr.mxu0 0.0
  %91 = vmatpush1.msra.mxu0 0.0
  %92 = vmatprep.subr.mxu0 0.0
  %93 = vmatpush1.msra.mxu0 0.0
  %94 = vmatprep.subr.mxu0 0.0
  %95 = vmatpush1.msra.mxu0 0.0
  %96 = vmatprep.subr.mxu0 0.0
  %97 = vmatpush1.msra.mxu0 0.0
  %98 = vmatprep.mubr.f32.mxu0 0.0
  %99 = vmatmul.mubr.f32.gmra.mrb[0].mxu0 %v17
  %v100 = vpop.f32.mrb[0].mxu0
  %v101 = vadd.f32 0.0, %v100
  %v102 = vpop.f32.mrb[0].mxu0
  %103 = vdwg.mxu0
  %v104 = vadd.f32 %v16, %v101
  %105 = vst [vmem:[%s2] sm:$0xff] %v104
  // Predicated region
  $region14: #{graphsage_forward.5} parent=0 // pred_check
    _
  $region15: #{graphsage_forward.5} parent=0 // pred_check_branch
    %107 = sbr.rel (0) target = $region17
  $region16: #{graphsage_forward.5} parent=0 // pred_region
    _
  $region17: #{graphsage_forward.5} parent=0 // pred_fallthru
    _
  // Predicated region
  $region18: #{graphsage_forward.5} parent=0 // pred_check
    _
  $region19: #{graphsage_forward.5} parent=0 // pred_check_branch
    %109 = sbr.rel (0) target = $region21
  $region20: #{graphsage_forward.5} parent=0 // pred_region
    _
  $region21: #{graphsage_forward.5} parent=0 // pred_fallthru
    _

</llo_original>
